<compile_context>
chip_gen: v5e
topology: v5e:2x2
jax: 0.10.0
libtpu: 0.0.40
codegen_flags: <defaults>
</compile_context>

<pallas_src>
import math

import jax
import jax.numpy as jnp
from jax.experimental import pallas as pl
from jax.experimental.pallas import tpu as pltpu


def plpconv_kernel(logits_ref, ft_ref, out_ref):
    # logits_ref : (TM, N_pad) f32, pre-masked (non-edges = -1e30)
    # ft_ref     : (N_pad, C_pad) bf16, resident across the grid
    # out_ref    : (TM, C_pad) f32
    logits = logits_ref[...]

    # edge_softmax over incoming edges of each dst row (numerically stable).
    m = jnp.max(logits, axis=-1, keepdims=True)
    p = jnp.exp(logits - m)                       # non-edges underflow to exactly 0
    denom = jnp.sum(p, axis=-1, keepdims=True)
    denom = jnp.maximum(denom, 1e-30)             # guard zero-in-degree rows

    # message passing: un-normalized matmul on the MXU (bf16 in, f32 acc),
    # then scale rows by 1/denom (EUP reciprocal) — same math, far fewer VPU ops.
    rst_un = jnp.dot(p.astype(jnp.bfloat16), ft_ref[...],
                     preferred_element_type=jnp.float32)
    inv = pl.reciprocal(denom, approx=True)

    # activation (ReLU)
    out_ref[...] = jnp.maximum(rst_un * inv, 0.0)


def plpconv_forward(masked_logits, soft_label, *, tm=128):
    """masked_logits: (N, N) f32 with -1e30 for non-edges; soft_label: (N, C)."""
    N = masked_logits.shape[0]
    C = soft_label.shape[1]

    # Pad dst/src axes to a multiple of TM (TM is a multiple of 128) and the
    # class axis to a lane-dense multiple of 128.
    n_pad = ((N + tm - 1) // tm) * tm
    c_pad = ((max(C, 128) + 127) // 128) * 128

    logits_p = jnp.full((n_pad, n_pad), -1e30, jnp.float32)
    logits_p = logits_p.at[:N, :N].set(masked_logits)
    ft_p = jnp.zeros((n_pad, c_pad), jnp.bfloat16)
    ft_p = ft_p.at[:N, :C].set(soft_label.astype(jnp.bfloat16))

    out = pl.pallas_call(
        plpconv_kernel,
        out_shape=jax.ShapeDtypeStruct((n_pad, c_pad), jnp.float32),
        grid=(n_pad // tm,),
        in_specs=[
            pl.BlockSpec((tm, n_pad), lambda i: (i, 0)),     # row tile of logits
            pl.BlockSpec((n_pad, c_pad), lambda i: (0, 0)),  # features resident
        ],
        out_specs=pl.BlockSpec((tm, c_pad), lambda i: (i, 0)),
        compiler_params=pltpu.CompilerParams(
            dimension_semantics=("parallel",)),
    )(logits_p, ft_p)
    return out[:N, :C]


def build_graph_and_params(num_nodes, num_classes, key):
    """Deterministic synthetic graph + xavier_normal edge params + soft labels.

    Returns the pre-masked dense logit matrix (dst, src) with -1e30 for
    non-edges, and the (N, C) soft labels.
    """
    # Edges: each node v receives from (v-1)%N, v, (v+1)%N -> every dst has edges.
    dst = jnp.repeat(jnp.arange(num_nodes), 3)
    src = jnp.reshape(jnp.stack(
        [(jnp.arange(num_nodes) - 1) % num_nodes,
         jnp.arange(num_nodes),
         (jnp.arange(num_nodes) + 1) % num_nodes], axis=1), (-1,))
    num_edges = dst.shape[0]

    k_e, k_ft = jax.random.split(key)

    # nn.init.xavier_normal_(e, gain=calculate_gain('relu')) on shape (E, 1)
    gain = math.sqrt(2.0)
    fan_in, fan_out = 1, num_edges
    std = gain * math.sqrt(2.0 / (fan_in + fan_out))
    e_param = jax.random.normal(k_e, (num_edges, 1), jnp.float32) * std

    # soft labels (output of a softmax classifier), shape (N, C)
    logits = jax.random.normal(k_ft, (num_nodes, num_classes), jnp.float32)
    soft_label = jax.nn.softmax(logits, axis=-1)

    # Densify with the mask folded in: non-edges = -1e30.
    masked_logits = jnp.full((num_nodes, num_nodes), -1e30, jnp.float32)
    masked_logits = masked_logits.at[dst, src].set(e_param[:, 0])
    return masked_logits, soft_label


def reference_forward(masked_logits, soft_label):
    m = jnp.max(masked_logits, axis=-1, keepdims=True)
    p = jnp.exp(masked_logits - m)
    a = p / jnp.sum(p, axis=-1, keepdims=True)
    return jnp.maximum(a @ soft_label, 0.0)


if __name__ == "__main__":
    num_nodes, num_classes = 200, 10          # exercises padding and grid > 1
    key = jax.random.PRNGKey(0)
    masked_logits, soft_label = build_graph_and_params(num_nodes, num_classes, key)

    out = plpconv_forward(masked_logits, soft_label, tm=128)
    out = jax.block_until_ready(out)

    ref = reference_forward(masked_logits, soft_label)
    assert out.shape == (num_nodes, num_classes)
    # bf16 MXU operands + approx reciprocal -> loosen tolerance vs f32 reference.
    assert jnp.allclose(out, ref, atol=1e-2, rtol=2e-2), (
        float(jnp.max(jnp.abs(out - ref))))
    print("KERNEL_OK")
</pallas_src>

<mosaic_0001>
module attributes {stable_mosaic.version = 11 : i64} {
  func.func @plpconv_kernel(%arg0: i32, %arg1: memref<128x256xf32, #tpu.memory_space<vmem>>, %arg2: memref<256x128xbf16, #tpu.memory_space<vmem>>, %arg3: memref<128x128xf32, #tpu.memory_space<vmem>>) attributes {dimension_semantics = [#tpu.dimension_semantics<parallel>], iteration_bounds = array<i64: 2>, scalar_prefetch = 0 : i64, scratch_operands = 0 : i64, tpu.core_type = #tpu.core_type<tc>, window_params = [{transform_indices = @transform_0, window_bounds = array<i64: 128, 256>}, {pipeline_mode = #tpu.pipeline_mode<synchronous>, transform_indices = @transform_1, window_bounds = array<i64: 256, 128>}, {transform_indices = @transform_2, window_bounds = array<i64: 128, 128>}]} {
    %c0 = arith.constant 0 : index
    %c0_0 = arith.constant 0 : index
    %0 = vector.load %arg1[%c0, %c0_0] : memref<128x256xf32, #tpu.memory_space<vmem>>, vector<128x256xf32>
    %cst = arith.constant dense<0xFF800000> : vector<128xf32>
    %1 = vector.multi_reduction <maximumf>, %0, %cst [1] : vector<128x256xf32> to vector<128xf32>
    %2 = vector.shape_cast %1 : vector<128xf32> to vector<128x1xf32>
    %3 = vector.broadcast %2 : vector<128x1xf32> to vector<128x256xf32>
    %4 = arith.subf %0, %3 : vector<128x256xf32>
    %5 = math.exp %4 : vector<128x256xf32>
    %cst_1 = arith.constant dense<0.000000e+00> : vector<128xf32>
    %6 = vector.multi_reduction <add>, %5, %cst_1 [1] : vector<128x256xf32> to vector<128xf32>
    %7 = vector.shape_cast %6 : vector<128xf32> to vector<128x1xf32>
    %cst_2 = arith.constant 1.000000e-30 : f32
    %8 = vector.broadcast %cst_2 : f32 to vector<128x1xf32>
    %9 = arith.maximumf %7, %8 : vector<128x1xf32>
    %10 = arith.truncf %5 : vector<128x256xf32> to vector<128x256xbf16>
    %c0_3 = arith.constant 0 : index
    %c0_4 = arith.constant 0 : index
    %11 = vector.load %arg2[%c0_3, %c0_4] : memref<256x128xbf16, #tpu.memory_space<vmem>>, vector<256x128xbf16>
    %cst_5 = arith.constant dense<0.000000e+00> : vector<128x128xf32>
    %12 = tpu.matmul %10, %11, %cst_5 {dimension_numbers = #tpu.dot_dimension_numbers<[1], [0], [0], [1], [0, 0, 1, 1], [], []>} : vector<128x256xbf16>, vector<256x128xbf16>, vector<128x128xf32> -> vector<128x128xf32>
    %13 = tpu.reciprocal %9 {approx = true} : vector<128x1xf32> -> vector<128x1xf32>
    %14 = vector.broadcast %13 : vector<128x1xf32> to vector<128x128xf32>
    %15 = arith.mulf %12, %14 : vector<128x128xf32>
    %cst_6 = arith.constant 0.000000e+00 : f32
    %16 = vector.broadcast %cst_6 : f32 to vector<128x128xf32>
    %17 = arith.maximumf %15, %16 : vector<128x128xf32>
    %c0_7 = arith.constant 0 : index
    %c0_8 = arith.constant 0 : index
    %18 = vector.load %arg3[%c0_7, %c0_8] : memref<128x128xf32, #tpu.memory_space<vmem>>, vector<128x128xf32>
    tpu.vector_store %arg3[%c0_7, %c0_8], %17 {strides = array<i32>} : memref<128x128xf32, #tpu.memory_space<vmem>>, vector<128x128xf32>,
    return
  }
  func.func @transform_0(%arg0: i32) -> (i32, i32) {
    %c0_i32 = arith.constant 0 : i32
    %c0_i32_0 = arith.constant 0 : i32
    return %arg0, %c0_i32 : i32, i32
  }
  func.func @transform_1(%arg0: i32) -> (i32, i32) {
    %c0_i32 = arith.constant 0 : i32
    %c0_i32_0 = arith.constant 0 : i32
    %c0_i32_1 = arith.constant 0 : i32
    return %c0_i32, %c0_i32_0 : i32, i32
  }
  func.func @transform_2(%arg0: i32) -> (i32, i32) {
    %c0_i32 = arith.constant 0 : i32
    %c0_i32_0 = arith.constant 0 : i32
    return %arg0, %c0_i32 : i32, i32
  }
}

</mosaic_0001>

<llo_original>
// kernel: tpu_custom_call.1
$region0: #{tpu_custom_call.1}
  #allocation0 [shape = 'u32[]', space=smem, size = 0x4, offset = 0x4, fixed_abs, tag = 'smem constant byte address 0x4 - core index']
  #allocation1 [shape = 'u32[72,128]{1,0:T(1,128)}', space=vmem, size = 0x9000, scoped, tag = 'internal scratch']
  %s0 = inlined_call_operand.hbm [shape: f32[256,256], index: 0, kind: input, shape index: {}]
  %s1 = inlined_call_operand.hbm [shape: bf16[256,128], index: 1, kind: input, shape index: {}]
  %s2 = inlined_call_operand.hbm [shape: f32[256,128], index: 2, kind: output, shape index: {}]
  %s3 = sld [smem:[#allocation0]]
  $region49: #{tpu_custom_call.1} parent=0
    _
  %s5 = ssub.s32 1, %s3
  %s6 = scalar_select 0, %s5, %s3
  $region1: #{tpu_custom_call.1} parent=0
    #allocation2 [shape = 'u8[262144]{0}', space=vmem, size = 0x40000, scoped, tag = 'input window, operand 0']
    #allocation3 [shape = 's32[2]{0}', space=sflag, size = 0x8, scoped, tag = 'scoped memory for tpu_custom_call.1']
    #allocation4 [shape = 's32[2]{0}', space=sflag, size = 0x8, scoped, tag = 'scoped memory for tpu_custom_call.1']
    #allocation5 [shape = 'u8[65536]{0}', space=vmem, size = 0x10000, scoped, tag = 'input window, operand 1, single buffered']
    #allocation6 [shape = 's32[1]{0}', space=sflag, size = 0x4, scoped, tag = 'scoped memory for tpu_custom_call.1']
    #allocation7 [shape = 'u8[131072]{0}', space=vmem, size = 0x20000, scoped, tag = 'output window, operand 0']
    %7 = vsyncpa [#allocation3], 0
    %s8 = scalar_lea.sflag [#allocation3], 1
    %9 = vsyncpa %s8, 0
    %10 = vsyncpa [#allocation6], 0
    %11 = vsyncpa [#allocation4], 0
    %s12 = scalar_lea.sflag [#allocation4], 1
    %13 = vsyncpa %s12, 0
    loop: start=0, step=1, limit=4
    $region2: #{tpu_custom_call.1} parent=1 // loop_pre_header
      _
    $region3: #{tpu_custom_call.1} parent=1 // loop_header
      %s15 = sphi 0, %s19
      %p16 = scmp.ge.s32.totalorder %s15, 4
      %s25 = sphi 0, %s27
      %s28 = sphi 0, %s25
      %s29 = sphi 0, %s28
      %s45 = sphi 0, %s29
      %s49 = sphi 0, %s49
      %s51 = sphi 0, %s49
      %s52 = sphi 0, %s51
      %s66 = sphi 0, %s52
      %s72 = sphi 0, %s74
      %s75 = sphi 0, %s72
      %s76 = sphi 0, %s75
      %s92 = sphi 0, %s76
    $region4: #{tpu_custom_call.1} parent=1 // loop_header_branch
      %18 = sbr.rel (%p16) target = $region8
    $region5: #{tpu_custom_call.1} parent=1 // loop_body
      %s20 = ssub.s32 %s15, 1
      %s21 = ssub.s32 %s15, 2
      %s22 = sadd.s32 %s15, 1
      %s23 = ssub.s32 %s15, %s22
      %p24 = scmp.eq.s32.totalorder %s23, 0
      %s26 = sadd.s32 %s25, 1
      %s27 = scalar_select %p24, %s25, %s26
      %p30 = pneg %p24
      %p31 = scmp.eq.s32.totalorder %s15, 1
      %p32 = por %p30, %p31
      %p33 = scmp.ne.s32.totalorder %s25, %s28
      %p34 = scmp.eq.s32.totalorder %s15, 0
      %p35 = por %p33, %p34
      %p36 = scmp.ne.s32.totalorder %s25, %s28
      %p37 = scmp.eq.s32.totalorder %s20, 1
      %p38 = por %p36, %p37
      %p39 = scmp.ne.s32.totalorder %s28, %s29
      %p40 = scmp.eq.s32.totalorder %s20, 0
      %p41 = por %p39, %p40
      %p42 = scmp.ne.s32.totalorder %s28, %s29
      %p43 = scmp.eq.s32.totalorder %s21, 1
      %p44 = por %p42, %p43
      %p46 = scmp.ne.s32.totalorder %s29, %s45
      %p47 = scmp.eq.s32.totalorder %s21, 0
      %p48 = por %p46, %p47
      %s50 = sadd.s32 %s49, 1
      %p53 = scmp.eq.s32.totalorder %s15, 1
      %p54 = scmp.ne.s32.totalorder %s49, %s51
      %p55 = scmp.eq.s32.totalorder %s15, 0
      %p56 = por %p54, %p55
      %p57 = scmp.ne.s32.totalorder %s49, %s51
      %p58 = scmp.eq.s32.totalorder %s20, 1
      %p59 = por %p57, %p58
      %p60 = scmp.ne.s32.totalorder %s51, %s52
      %p61 = scmp.eq.s32.totalorder %s20, 0
      %p62 = por %p60, %p61
      %p63 = scmp.ne.s32.totalorder %s51, %s52
      %p64 = scmp.eq.s32.totalorder %s21, 1
      %p65 = por %p63, %p64
      %p67 = scmp.ne.s32.totalorder %s52, %s66
      %p68 = scmp.eq.s32.totalorder %s21, 0
      %p69 = por %p67, %p68
      %s70 = ssub.s32 %s15, %s22
      %p71 = scmp.eq.s32.totalorder %s70, 0
      %s73 = sadd.s32 %s72, 1
      %s74 = scalar_select %p71, %s72, %s73
      %p77 = pneg %p71
      %p78 = scmp.eq.s32.totalorder %s15, 1
      %p79 = por %p77, %p78
      %p80 = scmp.ne.s32.totalorder %s72, %s75
      %p81 = scmp.eq.s32.totalorder %s15, 0
      %p82 = por %p80, %p81
      %p83 = scmp.ne.s32.totalorder %s72, %s75
      %p84 = scmp.eq.s32.totalorder %s20, 1
      %p85 = por %p83, %p84
      %p86 = scmp.ne.s32.totalorder %s75, %s76
      %p87 = scmp.eq.s32.totalorder %s20, 0
      %p88 = por %p86, %p87
      %p89 = scmp.ne.s32.totalorder %s75, %s76
      %p90 = scmp.eq.s32.totalorder %s21, 1
      %p91 = por %p89, %p90
      %p93 = scmp.ne.s32.totalorder %s76, %s92
      %p94 = scmp.eq.s32.totalorder %s21, 0
      %p95 = por %p93, %p94
      %p96 = scmp.le.s32.totalorder 1, %s15
      %p97 = scmp.lt.s32.totalorder %s15, 3
      %p98 = pnand %p96, %p97
      %p99 = pneg %p98
      // Predicated region
      $region9: #{tpu_custom_call.1} parent=5 // pred_check
        _
      $region10: #{tpu_custom_call.1} parent=5 // pred_check_branch
        %101 = sbr.rel (%p98) target = $region12
      $region11: #{tpu_custom_call.1} parent=5 // pred_region
        %s102 = ssub.s32 %s15, 1
        // Predicated region
        $region13: #{tpu_custom_call.1} parent=11 // pred_check
          %p103 = pneg %p62
        $region14: #{tpu_custom_call.1} parent=11 // pred_check_branch
          %105 = sbr.rel (%p103) target = $region16
        $region15: #{tpu_custom_call.1} parent=11 // pred_region
          %107 = vsyncadd [#allocation6], 0
          %s108 = sshll.u32 %s1, 4
          %s109 = int_to_ptr.hbm [resolvable:$true] %s108
          %s110 = sshll.u32 [#allocation5], 4
          %s111 = int_to_ptr.vmem [resolvable:$true] %s110
          %116 = dma.hbm_to_vmem [thread:$0]  %s109, 2048, %s111, [#allocation6], 64, 64, 4
        $region16: #{tpu_custom_call.1} parent=11 // pred_fallthru
          _
      $region12: #{tpu_custom_call.1} parent=5 // pred_fallthru
        _
      %p117 = scmp.lt.s32.totalorder %s15, 2
      // Predicated region
      $region17: #{tpu_custom_call.1} parent=5 // pred_check
        %p118 = pneg %p117
      $region18: #{tpu_custom_call.1} parent=5 // pred_check_branch
        %120 = sbr.rel (%p118) target = $region20
      $region19: #{tpu_custom_call.1} parent=5 // pred_region
        // Predicated region
        $region21: #{tpu_custom_call.1} parent=19 // pred_check
          %p121 = pneg %p35
        $region22: #{tpu_custom_call.1} parent=19 // pred_check_branch
          %123 = sbr.rel (%p121) target = $region24
        $region23: #{tpu_custom_call.1} parent=19 // pred_region
          %s124 = sand.u32 %s25, 1
          %s125 = scalar_lea.sflag [#allocation3], %s124
          %s126 = sand.u32 %s25, 1
          %s127 = smul.addr %s126, 256
          %s128 = scalar_lea.vmem [#allocation2], %s127
          %s129 = smul.u32 16, %s15
          %131 = vsyncadd %s125, 0
          %s132 = smul.addr %s129, 2
          %s133 = smul.addr %s132, 8
          %s134 = scalar_lea.hbm %s0, %s133
          %s135 = sshll.u32 %s134, 4
          %s136 = int_to_ptr.hbm [resolvable:$true] %s135
          %s137 = sshll.u32 %s128, 4
          %s138 = int_to_ptr.vmem [resolvable:$true] %s137
          %143 = dma.hbm_to_vmem [thread:$0]  %s136, 4096, %s138, %s125, 256, 256, 16
        $region24: #{tpu_custom_call.1} parent=19 // pred_fallthru
          _
      $region20: #{tpu_custom_call.1} parent=5 // pred_fallthru
        _
      %p144 = scmp.le.s32.totalorder 1, %s15
      %p145 = scmp.lt.s32.totalorder %s15, 3
      %p146 = pnand %p144, %p145
      %p147 = pneg %p146
      // Predicated region
      $region25: #{tpu_custom_call.1} parent=5 // pred_check
        _
      $region26: #{tpu_custom_call.1} parent=5 // pred_check_branch
        %149 = sbr.rel (%p146) target = $region28
      $region27: #{tpu_custom_call.1} parent=5 // pred_region
        %s150 = ssub.s32 %s15, 1
        %s151 = sand.u32 %s28, 1
        %s152 = scalar_lea.sflag [#allocation3], %s151
        %s153 = sand.u32 %s28, 1
        %s154 = smul.addr %s153, 256
        %s155 = scalar_lea.vmem [#allocation2], %s154
        // Predicated region
        $region29: #{tpu_custom_call.1} parent=27 // pred_check
          %p156 = pneg %p41
        $region30: #{tpu_custom_call.1} parent=27 // pred_check_branch
          %158 = sbr.rel (%p156) target = $region32
        $region31: #{tpu_custom_call.1} parent=27 // pred_region
          %160 = dma.done %s152, 4096
        $region32: #{tpu_custom_call.1} parent=27 // pred_fallthru
          _
        // Predicated region
        $region33: #{tpu_custom_call.1} parent=27 // pred_check
          %p161 = pneg %p62
        $region34: #{tpu_custom_call.1} parent=27 // pred_check_branch
          %163 = sbr.rel (%p161) target = $region36
        $region35: #{tpu_custom_call.1} parent=27 // pred_region
          %165 = dma.done [#allocation6], 2048
        $region36: #{tpu_custom_call.1} parent=27 // pred_fallthru
          _
        %s166 = sand.u32 %s28, 1
        %s167 = scalar_lea.sflag [#allocation3], %s166
        %s168 = sand.u32 %s28, 1
        %s169 = smul.addr %s168, 256
        %s170 = scalar_lea.vmem [#allocation2], %s169
        %p171 = pneg %p41
        %p172 = pneg %p38
        %p173 = pneg %p62
        %p174 = pneg %p59
        %p175 = pneg %p88
        %p176 = pneg %p85
        %s177 = sand.u32 %s75, 1
        %s178 = scalar_lea.sflag [#allocation4], %s177
        %s179 = sand.u32 %s75, 1
        %s180 = smul.addr %s179, 128
        %s181 = scalar_lea.vmem [#allocation7], %s180
        %s182 = smul.u32 16, %s20
        %s183 = smul.u32 16, %s20
        %v184 = vld [vmem:[%s155] sm:$0xff]
        %v185 = vld [vmem:[%s155 + $0x8] sm:$0xff]
        %v186 = vld [vmem:[%s155 + $0x10] sm:$0xff]
        %v187 = vld [vmem:[%s155 + $0x18] sm:$0xff]
        %v188 = vld [vmem:[%s155 + $0x20] sm:$0xff]
        %v189 = vld [vmem:[%s155 + $0x28] sm:$0xff]
        %v190 = vld [vmem:[%s155 + $0x30] sm:$0xff]
        %v191 = vld [vmem:[%s155 + $0x38] sm:$0xff]
        %v192 = vld [vmem:[%s155 + $0x40] sm:$0xff]
        %v193 = vld [vmem:[%s155 + $0x48] sm:$0xff]
        %v194 = vld [vmem:[%s155 + $0x50] sm:$0xff]
        %v195 = vld [vmem:[%s155 + $0x58] sm:$0xff]
        %v196 = vld [vmem:[%s155 + $0x60] sm:$0xff]
        %v197 = vld [vmem:[%s155 + $0x68] sm:$0xff]
        %v198 = vld [vmem:[%s155 + $0x70] sm:$0xff]
        %v199 = vld [vmem:[%s155 + $0x78] sm:$0xff]
        %v200 = vld [vmem:[%s155 + $0x80] sm:$0xff]
        %v201 = vld [vmem:[%s155 + $0x88] sm:$0xff]
        %v202 = vld [vmem:[%s155 + $0x90] sm:$0xff]
        %v203 = vld [vmem:[%s155 + $0x98] sm:$0xff]
        %v204 = vld [vmem:[%s155 + $0xa0] sm:$0xff]
        %v205 = vld [vmem:[%s155 + $0xa8] sm:$0xff]
        %v206 = vld [vmem:[%s155 + $0xb0] sm:$0xff]
        %v207 = vld [vmem:[%s155 + $0xb8] sm:$0xff]
        %v208 = vld [vmem:[%s155 + $0xc0] sm:$0xff]
        %v209 = vld [vmem:[%s155 + $0xc8] sm:$0xff]
        %v210 = vld [vmem:[%s155 + $0xd0] sm:$0xff]
        %v211 = vld [vmem:[%s155 + $0xd8] sm:$0xff]
        %v212 = vld [vmem:[%s155 + $0xe0] sm:$0xff]
        %v213 = vld [vmem:[%s155 + $0xe8] sm:$0xff]
        %v214 = vld [vmem:[%s155 + $0xf0] sm:$0xff]
        %v215 = vld [vmem:[%s155 + $0xf8] sm:$0xff]
        %v216 = vmax.f32 %v184, %v185
        %217 = vmax.xlane.f32.xlu0 %v216
        %v218 = vpop.xlane.xlu0 %217
        %v219 = vmax.f32 %v186, %v187
        %220 = vmax.xlane.f32.xlu0 %v219
        %v221 = vpop.xlane.xlu0 %220
        %v222 = vmax.f32 %v188, %v189
        %223 = vmax.xlane.f32.xlu0 %v222
        %v224 = vpop.xlane.xlu0 %223
        %v225 = vmax.f32 %v190, %v191
        %226 = vmax.xlane.f32.xlu0 %v225
        %v227 = vpop.xlane.xlu0 %226
        %v228 = vmax.f32 %v192, %v193
        %229 = vmax.xlane.f32.xlu0 %v228
        %v230 = vpop.xlane.xlu0 %229
        %v231 = vmax.f32 %v194, %v195
        %232 = vmax.xlane.f32.xlu0 %v231
        %v233 = vpop.xlane.xlu0 %232
        %v234 = vmax.f32 %v196, %v197
        %235 = vmax.xlane.f32.xlu0 %v234
        %v236 = vpop.xlane.xlu0 %235
        %v237 = vmax.f32 %v198, %v199
        %238 = vmax.xlane.f32.xlu0 %v237
        %v239 = vpop.xlane.xlu0 %238
        %v240 = vmax.f32 %v200, %v201
        %241 = vmax.xlane.f32.xlu0 %v240
        %v242 = vpop.xlane.xlu0 %241
        %v243 = vmax.f32 %v202, %v203
        %244 = vmax.xlane.f32.xlu0 %v243
        %v245 = vpop.xlane.xlu0 %244
        %v246 = vmax.f32 %v204, %v205
        %247 = vmax.xlane.f32.xlu0 %v246
        %v248 = vpop.xlane.xlu0 %247
        %v249 = vmax.f32 %v206, %v207
        %250 = vmax.xlane.f32.xlu0 %v249
        %v251 = vpop.xlane.xlu0 %250
        %v252 = vmax.f32 %v208, %v209
        %253 = vmax.xlane.f32.xlu0 %v252
        %v254 = vpop.xlane.xlu0 %253
        %v255 = vmax.f32 %v210, %v211
        %256 = vmax.xlane.f32.xlu0 %v255
        %v257 = vpop.xlane.xlu0 %256
        %v258 = vmax.f32 %v212, %v213
        %259 = vmax.xlane.f32.xlu0 %v258
        %v260 = vpop.xlane.xlu0 %259
        %v261 = vmax.f32 %v214, %v215
        %262 = vmax.xlane.f32.xlu0 %v261
        %v263 = vpop.xlane.xlu0 %262
        %v264 = vsub.f32 %v184, %v218
        %v265 = vsub.f32 %v185, %v218
        %v266 = vsub.f32 %v186, %v221
        %v267 = vsub.f32 %v187, %v221
        %v268 = vsub.f32 %v188, %v224
        %v269 = vsub.f32 %v189, %v224
        %v270 = vsub.f32 %v190, %v227
        %v271 = vsub.f32 %v191, %v227
        %v272 = vsub.f32 %v192, %v230
        %v273 = vsub.f32 %v193, %v230
        %v274 = vsub.f32 %v194, %v233
        %v275 = vsub.f32 %v195, %v233
        %v276 = vsub.f32 %v196, %v236
        %v277 = vsub.f32 %v197, %v236
        %v278 = vsub.f32 %v198, %v239
        %v279 = vsub.f32 %v199, %v239
        %v280 = vsub.f32 %v200, %v242
        %v281 = vsub.f32 %v201, %v242
        %v282 = vsub.f32 %v202, %v245
        %v283 = vsub.f32 %v203, %v245
        %v284 = vsub.f32 %v204, %v248
        %v285 = vsub.f32 %v205, %v248
        %v286 = vsub.f32 %v206, %v251
        %v287 = vsub.f32 %v207, %v251
        %v288 = vsub.f32 %v208, %v254
        %v289 = vsub.f32 %v209, %v254
        %v290 = vsub.f32 %v210, %v257
        %v291 = vsub.f32 %v211, %v257
        %v292 = vsub.f32 %v212, %v260
        %v293 = vsub.f32 %v213, %v260
        %v294 = vsub.f32 %v214, %v263
        %v295 = vsub.f32 %v215, %v263
        %v296 = vmul.f32 %v264, 1.442695
        %v297 = vpow.pop %v296
        %v298 = vmul.f32 %v265, 1.442695
        %v299 = vpow.pop %v298
        %v300 = vmul.f32 %v266, 1.442695
        %v301 = vpow.pop %v300
        %v302 = vmul.f32 %v267, 1.442695
        %v303 = vpow.pop %v302
        %v304 = vmul.f32 %v268, 1.442695
        %v305 = vpow.pop %v304
        %v306 = vmul.f32 %v269, 1.442695
        %v307 = vpow.pop %v306
        %v308 = vmul.f32 %v270, 1.442695
        %v309 = vpow.pop %v308
        %v310 = vmul.f32 %v271, 1.442695
        %v311 = vpow.pop %v310
        %v312 = vmul.f32 %v272, 1.442695
        %v313 = vpow.pop %v312
        %v314 = vmul.f32 %v273, 1.442695
        %v315 = vpow.pop %v314
        %v316 = vmul.f32 %v274, 1.442695
        %v317 = vpow.pop %v316
        %v318 = vmul.f32 %v275, 1.442695
        %v319 = vpow.pop %v318
        %v320 = vmul.f32 %v276, 1.442695
        %v321 = vpow.pop %v320
        %v322 = vmul.f32 %v277, 1.442695
        %v323 = vpow.pop %v322
        %v324 = vmul.f32 %v278, 1.442695
        %v325 = vpow.pop %v324
        %v326 = vmul.f32 %v279, 1.442695
        %v327 = vpow.pop %v326
        %v328 = vmul.f32 %v280, 1.442695
        %v329 = vpow.pop %v328
        %v330 = vmul.f32 %v281, 1.442695
        %v331 = vpow.pop %v330
        %v332 = vmul.f32 %v282, 1.442695
        %v333 = vpow.pop %v332
        %v334 = vmul.f32 %v283, 1.442695
        %v335 = vpow.pop %v334
        %v336 = vmul.f32 %v284, 1.442695
        %v337 = vpow.pop %v336
        %v338 = vmul.f32 %v285, 1.442695
        %v339 = vpow.pop %v338
        %v340 = vmul.f32 %v286, 1.442695
        %v341 = vpow.pop %v340
        %v342 = vmul.f32 %v287, 1.442695
        %v343 = vpow.pop %v342
        %v344 = vmul.f32 %v288, 1.442695
        %v345 = vpow.pop %v344
        %v346 = vmul.f32 %v289, 1.442695
        %v347 = vpow.pop %v346
        %v348 = vmul.f32 %v290, 1.442695
        %v349 = vpow.pop %v348
        %v350 = vmul.f32 %v291, 1.442695
        %v351 = vpow.pop %v350
        %v352 = vmul.f32 %v292, 1.442695
        %v353 = vpow.pop %v352
        %v354 = vmul.f32 %v293, 1.442695
        %v355 = vpow.pop %v354
        %v356 = vmul.f32 %v294, 1.442695
        %v357 = vpow.pop %v356
        %v358 = vmul.f32 %v295, 1.442695
        %v359 = vpow.pop %v358
        %v360 = vadd.f32 %v297, %v299
        %361 = vadd.xlane.f32.xlu0 %v360
        %v362 = vpop.xlane.xlu0 %361
        %v363 = vadd.f32 %v301, %v303
        %364 = vadd.xlane.f32.xlu0 %v363
        %v365 = vpop.xlane.xlu0 %364
        %v366 = vadd.f32 %v305, %v307
        %367 = vadd.xlane.f32.xlu0 %v366
        %v368 = vpop.xlane.xlu0 %367
        %v369 = vadd.f32 %v309, %v311
        %370 = vadd.xlane.f32.xlu0 %v369
        %v371 = vpop.xlane.xlu0 %370
        %v372 = vadd.f32 %v313, %v315
        %373 = vadd.xlane.f32.xlu0 %v372
        %v374 = vpop.xlane.xlu0 %373
        %v375 = vadd.f32 %v317, %v319
        %376 = vadd.xlane.f32.xlu0 %v375
        %v377 = vpop.xlane.xlu0 %376
        %v378 = vadd.f32 %v321, %v323
        %379 = vadd.xlane.f32.xlu0 %v378
        %v380 = vpop.xlane.xlu0 %379
        %v381 = vadd.f32 %v325, %v327
        %382 = vadd.xlane.f32.xlu0 %v381
        %v383 = vpop.xlane.xlu0 %382
        %v384 = vadd.f32 %v329, %v331
        %385 = vadd.xlane.f32.xlu0 %v384
        %v386 = vpop.xlane.xlu0 %385
        %v387 = vadd.f32 %v333, %v335
        %388 = vadd.xlane.f32.xlu0 %v387
        %v389 = vpop.xlane.xlu0 %388
        %v390 = vadd.f32 %v337, %v339
        %391 = vadd.xlane.f32.xlu0 %v390
        %v392 = vpop.xlane.xlu0 %391
        %v393 = vadd.f32 %v341, %v343
        %394 = vadd.xlane.f32.xlu0 %v393
        %v395 = vpop.xlane.xlu0 %394
        %v396 = vadd.f32 %v345, %v347
        %397 = vadd.xlane.f32.xlu0 %v396
        %v398 = vpop.xlane.xlu0 %397
        %v399 = vadd.f32 %v349, %v351
        %400 = vadd.xlane.f32.xlu0 %v399
        %v401 = vpop.xlane.xlu0 %400
        %v402 = vadd.f32 %v353, %v355
        %403 = vadd.xlane.f32.xlu0 %v402
        %v404 = vpop.xlane.xlu0 %403
        %v405 = vadd.f32 %v357, %v359
        %406 = vadd.xlane.f32.xlu0 %v405
        %v407 = vpop.xlane.xlu0 %406
        %v408 = vmax.f32 %v362, 1e-30
        %v409 = vmax.f32 %v365, 1e-30
        %v410 = vmax.f32 %v368, 1e-30
        %v411 = vmax.f32 %v371, 1e-30
        %v412 = vmax.f32 %v374, 1e-30
        %v413 = vmax.f32 %v377, 1e-30
        %v414 = vmax.f32 %v380, 1e-30
        %v415 = vmax.f32 %v383, 1e-30
        %v416 = vmax.f32 %v386, 1e-30
        %v417 = vmax.f32 %v389, 1e-30
        %v418 = vmax.f32 %v392, 1e-30
        %v419 = vmax.f32 %v395, 1e-30
        %v420 = vmax.f32 %v398, 1e-30
        %v421 = vmax.f32 %v401, 1e-30
        %v422 = vmax.f32 %v404, 1e-30
        %v423 = vmax.f32 %v407, 1e-30
        %v424 = vpack.c.bf16 %v301, %v297
        %v425 = vpack.c.bf16 %v303, %v299
        %v426 = vpack.c.bf16 %v309, %v305
        %v427 = vpack.c.bf16 %v311, %v307
        %v428 = vpack.c.bf16 %v317, %v313
        %v429 = vpack.c.bf16 %v319, %v315
        %v430 = vpack.c.bf16 %v325, %v321
        %v431 = vpack.c.bf16 %v327, %v323
        %v432 = vpack.c.bf16 %v333, %v329
        %v433 = vpack.c.bf16 %v335, %v331
        %v434 = vpack.c.bf16 %v341, %v337
        %v435 = vpack.c.bf16 %v343, %v339
        %v436 = vpack.c.bf16 %v349, %v345
        %v437 = vpack.c.bf16 %v351, %v347
        %v438 = vpack.c.bf16 %v357, %v353
        %v439 = vpack.c.bf16 %v359, %v355
        %v440 = vld [vmem:[#allocation5] sm:$0xf]
        %v441 = vld [vmem:[#allocation5 + $0x4] sm:$0xf]
        %v442 = vld [vmem:[#allocation5 + $0x8] sm:$0xf]
        %v443 = vld [vmem:[#allocation5 + $0xc] sm:$0xf]
        %v444 = vld [vmem:[#allocation5 + $0x10] sm:$0xf]
        %v445 = vld [vmem:[#allocation5 + $0x14] sm:$0xf]
        %v446 = vld [vmem:[#allocation5 + $0x18] sm:$0xf]
        %v447 = vld [vmem:[#allocation5 + $0x1c] sm:$0xf]
        %v448 = vld [vmem:[#allocation5 + $0x20] sm:$0xf]
        %v449 = vld [vmem:[#allocation5 + $0x24] sm:$0xf]
        %v450 = vld [vmem:[#allocation5 + $0x28] sm:$0xf]
        %v451 = vld [vmem:[#allocation5 + $0x2c] sm:$0xf]
        %v452 = vld [vmem:[#allocation5 + $0x30] sm:$0xf]
        %v453 = vld [vmem:[#allocation5 + $0x34] sm:$0xf]
        %v454 = vld [vmem:[#allocation5 + $0x38] sm:$0xf]
        %v455 = vld [vmem:[#allocation5 + $0x3c] sm:$0xf]
        %v456 = vld [vmem:[#allocation5 + $0x40] sm:$0xf]
        %v457 = vld [vmem:[#allocation5 + $0x44] sm:$0xf]
        %v458 = vld [vmem:[#allocation5 + $0x48] sm:$0xf]
        %v459 = vld [vmem:[#allocation5 + $0x4c] sm:$0xf]
        %v460 = vld [vmem:[#allocation5 + $0x50] sm:$0xf]
        %v461 = vld [vmem:[#allocation5 + $0x54] sm:$0xf]
        %v462 = vld [vmem:[#allocation5 + $0x58] sm:$0xf]
        %v463 = vld [vmem:[#allocation5 + $0x5c] sm:$0xf]
        %v464 = vld [vmem:[#allocation5 + $0x60] sm:$0xf]
        %v465 = vld [vmem:[#allocation5 + $0x64] sm:$0xf]
        %v466 = vld [vmem:[#allocation5 + $0x68] sm:$0xf]
        %v467 = vld [vmem:[#allocation5 + $0x6c] sm:$0xf]
        %v468 = vld [vmem:[#allocation5 + $0x70] sm:$0xf]
        %v469 = vld [vmem:[#allocation5 + $0x74] sm:$0xf]
        %v470 = vld [vmem:[#allocation5 + $0x78] sm:$0xf]
        %v471 = vld [vmem:[#allocation5 + $0x7c] sm:$0xf]
        %v504 = vunpack.c.l.b16 %v440
        %v505 = vunpack.c.l.b16 %v441
        %v506 = vunpack.c.l.b16 %v442
        %v507 = vunpack.c.l.b16 %v443
        %v508 = vunpack.c.l.b16 %v444
        %v509 = vunpack.c.l.b16 %v445
        %v510 = vunpack.c.l.b16 %v446
        %v511 = vunpack.c.l.b16 %v447
        %v512 = vunpack.c.l.b16 %v448
        %v513 = vunpack.c.l.b16 %v449
        %v514 = vunpack.c.l.b16 %v450
        %v515 = vunpack.c.l.b16 %v451
        %v516 = vunpack.c.l.b16 %v452
        %v517 = vunpack.c.l.b16 %v453
        %v518 = vunpack.c.l.b16 %v454
        %v519 = vunpack.c.l.b16 %v455
        %v520 = vunpack.c.l.b16 %v456
        %v521 = vunpack.c.l.b16 %v457
        %v522 = vunpack.c.l.b16 %v458
        %v523 = vunpack.c.l.b16 %v459
        %v524 = vunpack.c.l.b16 %v460
        %v525 = vunpack.c.l.b16 %v461
        %v526 = vunpack.c.l.b16 %v462
        %v527 = vunpack.c.l.b16 %v463
        %v528 = vunpack.c.l.b16 %v464
        %v529 = vunpack.c.l.b16 %v465
        %v530 = vunpack.c.l.b16 %v466
        %v531 = vunpack.c.l.b16 %v467
        %v532 = vunpack.c.l.b16 %v468
        %v533 = vunpack.c.l.b16 %v469
        %v534 = vunpack.c.l.b16 %v470
        %v535 = vunpack.c.l.b16 %v471
        %v536 = vpack.c.b16 %v505, %v504
        %v537 = vpack.c.b16 %v507, %v506
        %v538 = vpack.c.b16 %v509, %v508
        %v539 = vpack.c.b16 %v511, %v510
        %v540 = vpack.c.b16 %v513, %v512
        %v541 = vpack.c.b16 %v515, %v514
        %v542 = vpack.c.b16 %v517, %v516
        %v543 = vpack.c.b16 %v519, %v518
        %v544 = vpack.c.b16 %v521, %v520
        %v545 = vpack.c.b16 %v523, %v522
        %v546 = vpack.c.b16 %v525, %v524
        %v547 = vpack.c.b16 %v527, %v526
        %v548 = vpack.c.b16 %v529, %v528
        %v549 = vpack.c.b16 %v531, %v530
        %v550 = vpack.c.b16 %v533, %v532
        %v551 = vpack.c.b16 %v535, %v534
        %568 = vmatpush.bf16.msra.mxu0 %v543
        %569 = vmatpush.bf16.msra.mxu0 %v542
        %570 = vmatpush.bf16.msra.mxu0 %v541
        %571 = vmatpush.bf16.msra.mxu0 %v540
        %572 = vmatpush.bf16.msra.mxu0 %v539
        %573 = vmatpush.bf16.msra.mxu0 %v538
        %574 = vmatpush.bf16.msra.mxu0 %v537
        %575 = vmatpush.bf16.msra.mxu0 %v536
        %576 = vmatmul.bf16.gmra.mxu0 %v424
        %v577 = vpop.f32.mrf.mxu0
        %v578 = vadd.f32 0.0, %v577
        %v579 = vpop.f32.mrf.mxu0
        %v580 = vadd.f32 0.0, %v579
        %581 = vmatmul.bf16.gmra.mxu0 %v426
        %v582 = vpop.f32.mrf.mxu0
        %v583 = vadd.f32 0.0, %v582
        %v584 = vpop.f32.mrf.mxu0
        %v585 = vadd.f32 0.0, %v584
        %586 = vmatmul.bf16.gmra.mxu0 %v428
        %v587 = vpop.f32.mrf.mxu0
        %v588 = vadd.f32 0.0, %v587
        %v589 = vpop.f32.mrf.mxu0
        %v590 = vadd.f32 0.0, %v589
        %591 = vmatmul.bf16.gmra.mxu0 %v430
        %v592 = vpop.f32.mrf.mxu0
        %v593 = vadd.f32 0.0, %v592
        %v594 = vpop.f32.mrf.mxu0
        %v595 = vadd.f32 0.0, %v594
        %596 = vmatmul.bf16.gmra.mxu0 %v432
        %v597 = vpop.f32.mrf.mxu0
        %v598 = vadd.f32 0.0, %v597
        %v599 = vpop.f32.mrf.mxu0
        %v600 = vadd.f32 0.0, %v599
        %601 = vmatmul.bf16.gmra.mxu0 %v434
        %v602 = vpop.f32.mrf.mxu0
        %v603 = vadd.f32 0.0, %v602
        %v604 = vpop.f32.mrf.mxu0
        %v605 = vadd.f32 0.0, %v604
        %606 = vmatmul.bf16.gmra.mxu0 %v436
        %v607 = vpop.f32.mrf.mxu0
        %v608 = vadd.f32 0.0, %v607
        %v609 = vpop.f32.mrf.mxu0
        %v610 = vadd.f32 0.0, %v609
        %611 = vmatmul.bf16.gmra.mxu0 %v438
        %v612 = vpop.f32.mrf.mxu0
        %v613 = vadd.f32 0.0, %v612
        %v614 = vpop.f32.mrf.mxu0
        %v615 = vadd.f32 0.0, %v614
        %616 = vdwg.mxu0
        %617 = vmatpush.bf16.msra.mxu0 %v551
        %618 = vmatpush.bf16.msra.mxu0 %v550
        %619 = vmatpush.bf16.msra.mxu0 %v549
        %620 = vmatpush.bf16.msra.mxu0 %v548
        %621 = vmatpush.bf16.msra.mxu0 %v547
        %622 = vmatpush.bf16.msra.mxu0 %v546
        %623 = vmatpush.bf16.msra.mxu0 %v545
        %624 = vmatpush.bf16.msra.mxu0 %v544
        %625 = vmatmul.bf16.gmra.mxu0 %v425
        %v626 = vpop.f32.mrf.mxu0
        %v627 = vadd.f32 %v578, %v626
        %v628 = vpop.f32.mrf.mxu0
        %v629 = vadd.f32 %v580, %v628
        %630 = vmatmul.bf16.gmra.mxu0 %v427
        %v631 = vpop.f32.mrf.mxu0
        %v632 = vadd.f32 %v583, %v631
        %v633 = vpop.f32.mrf.mxu0
        %v634 = vadd.f32 %v585, %v633
        %635 = vmatmul.bf16.gmra.mxu0 %v429
        %v636 = vpop.f32.mrf.mxu0
        %v637 = vadd.f32 %v588, %v636
        %v638 = vpop.f32.mrf.mxu0
        %v639 = vadd.f32 %v590, %v638
        %640 = vmatmul.bf16.gmra.mxu0 %v431
        %v641 = vpop.f32.mrf.mxu0
        %v642 = vadd.f32 %v593, %v641
        %v643 = vpop.f32.mrf.mxu0
        %v644 = vadd.f32 %v595, %v643
        %645 = vmatmul.bf16.gmra.mxu0 %v433
        %v646 = vpop.f32.mrf.mxu0
        %v647 = vadd.f32 %v598, %v646
        %v648 = vpop.f32.mrf.mxu0
        %v649 = vadd.f32 %v600, %v648
        %650 = vmatmul.bf16.gmra.mxu0 %v435
        %v651 = vpop.f32.mrf.mxu0
        %v652 = vadd.f32 %v603, %v651
        %v653 = vpop.f32.mrf.mxu0
        %v654 = vadd.f32 %v605, %v653
        %655 = vmatmul.bf16.gmra.mxu0 %v437
        %v656 = vpop.f32.mrf.mxu0
        %v657 = vadd.f32 %v608, %v656
        %v658 = vpop.f32.mrf.mxu0
        %v659 = vadd.f32 %v610, %v658
        %660 = vmatmul.bf16.gmra.mxu0 %v439
        %v661 = vpop.f32.mrf.mxu0
        %v662 = vadd.f32 %v613, %v661
        %v663 = vpop.f32.mrf.mxu0
        %v664 = vadd.f32 %v615, %v663
        %665 = vdwg.mxu0
        %v666 = vrcp.pop %v408
        %v667 = vrcp.pop %v409
        %v668 = vrcp.pop %v410
        %v669 = vrcp.pop %v411
        %v670 = vrcp.pop %v412
        %v671 = vrcp.pop %v413
        %v672 = vrcp.pop %v414
        %v673 = vrcp.pop %v415
        %v674 = vrcp.pop %v416
        %v675 = vrcp.pop %v417
        %v676 = vrcp.pop %v418
        %v677 = vrcp.pop %v419
        %v678 = vrcp.pop %v420
        %v679 = vrcp.pop %v421
        %v680 = vrcp.pop %v422
        %v681 = vrcp.pop %v423
        %v682 = vmul.f32 %v627, %v666
        %v683 = vmul.f32 %v629, %v667
        %v684 = vmul.f32 %v632, %v668
        %v685 = vmul.f32 %v634, %v669
        %v686 = vmul.f32 %v637, %v670
        %v687 = vmul.f32 %v639, %v671
        %v688 = vmul.f32 %v642, %v672
        %v689 = vmul.f32 %v644, %v673
        %v690 = vmul.f32 %v647, %v674
        %v691 = vmul.f32 %v649, %v675
        %v692 = vmul.f32 %v652, %v676
        %v693 = vmul.f32 %v654, %v677
        %v694 = vmul.f32 %v657, %v678
        %v695 = vmul.f32 %v659, %v679
        %v696 = vmul.f32 %v662, %v680
        %v697 = vmul.f32 %v664, %v681
        %v698 = vmax.f32 %v682, 0.0
        %v699 = vmax.f32 %v683, 0.0
        %v700 = vmax.f32 %v684, 0.0
        %v701 = vmax.f32 %v685, 0.0
        %v702 = vmax.f32 %v686, 0.0
        %v703 = vmax.f32 %v687, 0.0
        %v704 = vmax.f32 %v688, 0.0
        %v705 = vmax.f32 %v689, 0.0
        %v706 = vmax.f32 %v690, 0.0
        %v707 = vmax.f32 %v691, 0.0
        %v708 = vmax.f32 %v692, 0.0
        %v709 = vmax.f32 %v693, 0.0
        %v710 = vmax.f32 %v694, 0.0
        %v711 = vmax.f32 %v695, 0.0
        %v712 = vmax.f32 %v696, 0.0
        %v713 = vmax.f32 %v697, 0.0
        %714 = vst [vmem:[%s181] sm:$0xff] %v698
        %715 = vst [vmem:[%s181 + $0x8] sm:$0xff] %v699
        %716 = vst [vmem:[%s181 + $0x10] sm:$0xff] %v700
        %717 = vst [vmem:[%s181 + $0x18] sm:$0xff] %v701
        %718 = vst [vmem:[%s181 + $0x20] sm:$0xff] %v702
        %719 = vst [vmem:[%s181 + $0x28] sm:$0xff] %v703
        %720 = vst [vmem:[%s181 + $0x30] sm:$0xff] %v704
        %721 = vst [vmem:[%s181 + $0x38] sm:$0xff] %v705
        %722 = vst [vmem:[%s181 + $0x40] sm:$0xff] %v706
        %723 = vst [vmem:[%s181 + $0x48] sm:$0xff] %v707
        %724 = vst [vmem:[%s181 + $0x50] sm:$0xff] %v708
        %725 = vst [vmem:[%s181 + $0x58] sm:$0xff] %v709
        %726 = vst [vmem:[%s181 + $0x60] sm:$0xff] %v710
        %727 = vst [vmem:[%s181 + $0x68] sm:$0xff] %v711
        %728 = vst [vmem:[%s181 + $0x70] sm:$0xff] %v712
        %729 = vst [vmem:[%s181 + $0x78] sm:$0xff] %v713
        %s730 = sand.u32 %s75, 1
        %s731 = scalar_lea.sflag [#allocation4], %s730
        %s732 = sand.u32 %s75, 1
        %s733 = smul.addr %s732, 128
        %s734 = scalar_lea.vmem [#allocation7], %s733
        // Predicated region
        $region37: #{tpu_custom_call.1} parent=27 // pred_check
          %p735 = pneg %p85
        $region38: #{tpu_custom_call.1} parent=27 // pred_check_branch
          %737 = sbr.rel (%p735) target = $region40
        $region39: #{tpu_custom_call.1} parent=27 // pred_region
          %s738 = smul.u32 16, %s20
          %740 = vsyncadd %s731, 0
          %s741 = smul.addr %s738, 8
          %s742 = scalar_lea.hbm %s2, %s741
          %s743 = sshll.u32 %s734, 4
          %s744 = int_to_ptr.vmem [resolvable:$true] %s743
          %s745 = sshll.u32 %s742, 4
          %s746 = int_to_ptr.hbm [resolvable:$true] %s745
          %751 = dma.vmem_to_hbm [thread:$0]  %s744, 2048, %s746, %s731, 128, 128, 8
        $region40: #{tpu_custom_call.1} parent=27 // pred_fallthru
          _
      $region28: #{tpu_custom_call.1} parent=5 // pred_fallthru
        _
      %p752 = scmp.le.s32.totalorder 2, %s15
      // Predicated region
      $region41: #{tpu_custom_call.1} parent=5 // pred_check
        %p753 = pneg %p752
      $region42: #{tpu_custom_call.1} parent=5 // pred_check_branch
        %755 = sbr.rel (%p753) target = $region44
      $region43: #{tpu_custom_call.1} parent=5 // pred_region
        %s756 = ssub.s32 %s15, 2
        // Predicated region
        $region45: #{tpu_custom_call.1} parent=43 // pred_check
          %p757 = pneg %p91
        $region46: #{tpu_custom_call.1} parent=43 // pred_check_branch
          %759 = sbr.rel (%p757) target = $region48
        $region47: #{tpu_custom_call.1} parent=43 // pred_region
          %s760 = sand.u32 %s76, 1
          %s761 = scalar_lea.sflag [#allocation4], %s760
          %s762 = sand.u32 %s76, 1
          %s763 = smul.addr %s762, 128
          %s764 = scalar_lea.vmem [#allocation7], %s763
          %766 = dma.done %s761, 2048
        $region48: #{tpu_custom_call.1} parent=43 // pred_fallthru
          _
      $region44: #{tpu_custom_call.1} parent=5 // pred_fallthru
        _
    $region6: #{tpu_custom_call.1} parent=1 // loop_footer
      %s19 = sadd.s32 1, %s15
    $region7: #{tpu_custom_call.1} parent=1 // loop_footer_branch
      %14 = sbr.rel target = $region3
    $region8: #{tpu_custom_call.1} parent=1 // loop_exit
      _
    %767 = vsyncpa [#allocation3], 1
    %s768 = scalar_lea.sflag [#allocation3], 1
    %769 = vsyncpa %s768, 1
    %770 = vsyncpa [#allocation6], 1
    %771 = vsyncpa [#allocation4], 1
    %s772 = scalar_lea.sflag [#allocation4], 1
    %773 = vsyncpa %s772, 1

</llo_original>
